<compile_context>
chip_gen: v7x
topology: tpu7x:2x2x1
jax: 0.10.0
libtpu: 0.0.40
codegen_flags: <defaults>
</compile_context>

<pallas_src>
import jax
import jax.numpy as jnp
from jax.experimental import pallas as pl
from jax.experimental.pallas import tpu as pltpu

EPS = 1e-5


def _make_kernel(cin, planes, has_proj, compute_dtype):
    """Kernel factory; cin/planes/has_proj/compute_dtype are static."""

    def _bn_fold(x, gamma, beta):
        # Training-mode BatchNorm1d over all tokens (axis 0), biased variance,
        # folded into a single per-channel scale/shift.  All in f32.
        mean = jnp.mean(x, axis=0, keepdims=True)
        var = jnp.mean(jnp.square(x - mean), axis=0, keepdims=True)
        scale = gamma * jax.lax.rsqrt(var + EPS)
        shift = beta - mean * scale
        return x * scale + shift

    def kernel(xcol_ref, xcen_ref, kprev_ref, knext_ref,
               w1_ref, g1_ref, b1_ref, w2_ref, g2_ref, b2_ref, *rest):
        if has_proj:
            wsc_ref, gsc_ref, bsc_ref, out_ref = rest
        else:
            (out_ref,) = rest

        # ---- conv1: single fused matmul, K = 3*Cin (im2col built in wrapper) ----
        a1 = jnp.dot(xcol_ref[...], w1_ref[...],
                     preferred_element_type=jnp.float32)          # (M, planes) f32
        h = jnp.maximum(_bn_fold(a1, g1_ref[...], b1_ref[...]), 0.0)

        # ---- conv2: shifted operands built in registers (no VMEM scratch) ----
        hb = h.astype(compute_dtype)
        zrow = jnp.zeros((1, planes), compute_dtype)
        h_prev = jnp.concatenate([zrow, hb[:-1, :]], axis=0) * kprev_ref[...]
        h_next = jnp.concatenate([hb[1:, :], zrow], axis=0) * knext_ref[...]
        a2 = jnp.dot(h_prev, w2_ref[0], preferred_element_type=jnp.float32)
        a2 = a2 + jnp.dot(hb, w2_ref[1], preferred_element_type=jnp.float32)
        a2 = a2 + jnp.dot(h_next, w2_ref[2], preferred_element_type=jnp.float32)
        out = _bn_fold(a2, g2_ref[...], b2_ref[...])

        # ---- shortcut ----
        if has_proj:
            sc = jnp.dot(xcen_ref[...], wsc_ref[...],
                         preferred_element_type=jnp.float32)
            sc = _bn_fold(sc, gsc_ref[...], bsc_ref[...])
        else:
            sc = xcen_ref[...]                                    # identity, full f32

        out_ref[...] = jnp.maximum(out + sc, 0.0)

    return kernel


def basic_block_forward(x_ncl, params, stride, compute_dtype=jnp.bfloat16):
    """x_ncl: (N, C_in, L) float32 (PyTorch layout).  Returns (N, planes, L_out)."""
    n, cin, l_in = x_ncl.shape
    planes = params["w1"].shape[0]
    l_out = (l_in - 1) // stride + 1
    m = n * l_out
    has_proj = (stride != 1) or (cin != planes)

    # NCL -> NLC, zero-pad L by 1, im2col over the 3 conv1 taps (stride applied
    # here so the kernel never does strided sublane gathers).  XLA fuses these.
    x = jnp.transpose(x_ncl, (0, 2, 1)).astype(jnp.float32)        # (N, L, Cin)
    xpad = jnp.pad(x, ((0, 0), (1, 1), (0, 0)))                    # (N, L+2, Cin)
    span = stride * (l_out - 1) + 1
    xcol = jnp.concatenate(
        [xpad[:, k:k + span:stride, :] for k in range(3)], axis=-1)
    xcol = xcol.reshape(m, 3 * cin).astype(compute_dtype)          # (M, 3*Cin)

    # Center window (x at position stride*t): matmul operand for the projection
    # shortcut, or the full-precision residual for the identity shortcut.
    xcen = x[:, ::stride, :].reshape(m, cin)
    xcen = xcen.astype(compute_dtype) if has_proj else xcen        # f32 if identity

    # Segment-boundary keep-masks for conv2's zero padding.
    t_idx = jnp.tile(jnp.arange(l_out, dtype=jnp.int32), n)
    keep_prev = (t_idx != 0).astype(compute_dtype).reshape(m, 1)
    keep_next = (t_idx != l_out - 1).astype(compute_dtype).reshape(m, 1)

    # Weights: PyTorch (Cout, Cin, K) -> tap-major/channel-minor layouts.
    w1 = jnp.transpose(params["w1"], (2, 1, 0)).reshape(3 * cin, planes)
    w1 = w1.astype(compute_dtype)                                  # (3*Cin, planes)
    w2 = jnp.transpose(params["w2"], (2, 1, 0)).astype(compute_dtype)  # (3, planes, planes)
    g1 = params["g1"].reshape(1, planes).astype(jnp.float32)
    b1 = params["b1"].reshape(1, planes).astype(jnp.float32)
    g2 = params["g2"].reshape(1, planes).astype(jnp.float32)
    b2 = params["b2"].reshape(1, planes).astype(jnp.float32)

    args = [xcol, xcen, keep_prev, keep_next, w1, g1, b1, w2, g2, b2]
    flops = 2 * m * (3 * cin) * planes + 3 * 2 * m * planes * planes + 12 * m * planes
    if has_proj:
        wsc = jnp.transpose(params["wsc"][:, :, 0]).astype(compute_dtype)  # (Cin, planes)
        gsc = params["gsc"].reshape(1, planes).astype(jnp.float32)
        bsc = params["bsc"].reshape(1, planes).astype(jnp.float32)
        args += [wsc, gsc, bsc]
        flops += 2 * m * cin * planes

    bytes_accessed = m * planes * 4 + sum(
        int(a.size) * a.dtype.itemsize for a in args)
    cost = pl.CostEstimate(flops=int(flops),
                           transcendentals=int(3 * planes),
                           bytes_accessed=int(bytes_accessed))

    kernel = _make_kernel(cin, planes, has_proj, compute_dtype)
    out2d = pl.pallas_call(
        kernel,
        out_shape=jax.ShapeDtypeStruct((m, planes), jnp.float32),
        in_specs=[pl.BlockSpec(memory_space=pltpu.MemorySpace.VMEM)] * len(args),
        out_specs=pl.BlockSpec(memory_space=pltpu.MemorySpace.VMEM),
        cost_estimate=cost,
    )(*args)

    return jnp.transpose(out2d.reshape(n, l_out, planes), (0, 2, 1))


# ----------------------------- reference (plain JAX) -----------------------------
def _ref_bn(x, g, b):
    mean = jnp.mean(x, axis=(0, 2), keepdims=True)
    var = jnp.mean(jnp.square(x - mean), axis=(0, 2), keepdims=True)
    return (x - mean) * jax.lax.rsqrt(var + EPS) * g[None, :, None] + b[None, :, None]


def ref_basic_block(x, params, stride, compute_dtype=jnp.float32):
    """PyTorch BasicBlock forward; conv operands cast to compute_dtype, f32 acc."""
    def conv(inp, w, s):
        pad = (1, 1) if w.shape[-1] == 3 else (0, 0)
        return jax.lax.conv_general_dilated(
            inp.astype(compute_dtype), w.astype(compute_dtype),
            window_strides=(s,), padding=[pad],
            dimension_numbers=("NCH", "OIH", "NCH"),
            preferred_element_type=jnp.float32)

    out = jax.nn.relu(_ref_bn(conv(x, params["w1"], stride), params["g1"], params["b1"]))
    out = _ref_bn(conv(out, params["w2"], 1), params["g2"], params["b2"])
    if "wsc" in params:
        sc = _ref_bn(conv(x, params["wsc"], stride), params["gsc"], params["bsc"])
    else:
        sc = x
    return jax.nn.relu(out + sc)


def init_params(key, in_planes, planes, stride):
    ks = jax.random.split(key, 8)
    p = {
        "w1": 0.3 * jax.random.normal(ks[0], (planes, in_planes, 3), jnp.float32),
        "g1": 1.0 + 0.1 * jax.random.normal(ks[1], (planes,), jnp.float32),
        "b1": 0.1 * jax.random.normal(ks[2], (planes,), jnp.float32),
        "w2": 0.3 * jax.random.normal(ks[3], (planes, planes, 3), jnp.float32),
        "g2": 1.0 + 0.1 * jax.random.normal(ks[4], (planes,), jnp.float32),
        "b2": 0.1 * jax.random.normal(ks[5], (planes,), jnp.float32),
    }
    if stride != 1 or in_planes != planes:
        p["wsc"] = 0.3 * jax.random.normal(ks[6], (planes, in_planes, 1), jnp.float32)
        p["gsc"] = 1.0 + 0.1 * jax.random.normal(ks[7], (planes,), jnp.float32)
        p["bsc"] = jnp.zeros((planes,), jnp.float32)
    return p


if __name__ == "__main__":
    key = jax.random.PRNGKey(0)
    kx, kp1, kp2 = jax.random.split(key, 3)

    N, L = 2, 16
    x = jax.random.normal(kx, (N, 4, L), jnp.float32)

    # Case 1: stride=1, in_planes==planes -> identity shortcut.
    # Case 2: stride=2, planes!=in_planes -> projection shortcut (conv1x1 + BN).
    for in_planes, planes, stride, kparam in [(4, 4, 1, kp1), (4, 8, 2, kp2)]:
        params = init_params(kparam, in_planes, planes, stride)
        l_out = (L - 1) // stride + 1

        # Full-precision compute path vs full-precision reference.
        out_f32 = basic_block_forward(x, params, stride, compute_dtype=jnp.float32)
        jax.block_until_ready(out_f32)
        ref_f32 = ref_basic_block(x, params, stride, compute_dtype=jnp.float32)
        assert out_f32.shape == (N, planes, l_out)
        assert float(jnp.max(jnp.abs(out_f32 - ref_f32))) < 1e-2, "mismatch (f32 path)"

        # bf16-matmul path (perf config) vs reference with matching bf16 operands.
        out_bf = basic_block_forward(x, params, stride, compute_dtype=jnp.bfloat16)
        jax.block_until_ready(out_bf)
        ref_bf = ref_basic_block(x, params, stride, compute_dtype=jnp.bfloat16)
        assert out_bf.shape == (N, planes, l_out)
        assert float(jnp.max(jnp.abs(out_bf - ref_bf))) < 2e-2, "mismatch (bf16 path)"

    print("KERNEL_OK")
</pallas_src>

<mosaic_0001>
module attributes {stable_mosaic.version = 11 : i64} {
  func.func @kernel(%arg0: memref<32x12xf32, #tpu.memory_space<vmem>>, %arg1: memref<32x4xf32, #tpu.memory_space<vmem>>, %arg2: memref<32x1xf32, #tpu.memory_space<vmem>>, %arg3: memref<32x1xf32, #tpu.memory_space<vmem>>, %arg4: memref<12x4xf32, #tpu.memory_space<vmem>>, %arg5: memref<1x4xf32, #tpu.memory_space<vmem>>, %arg6: memref<1x4xf32, #tpu.memory_space<vmem>>, %arg7: memref<3x4x4xf32, #tpu.memory_space<vmem>>, %arg8: memref<1x4xf32, #tpu.memory_space<vmem>>, %arg9: memref<1x4xf32, #tpu.memory_space<vmem>>, %arg10: memref<32x4xf32, #tpu.memory_space<vmem>>) attributes {dimension_semantics = [], scalar_prefetch = 0 : i64, scratch_operands = 0 : i64, tpu.core_type = #tpu.core_type<tc>} {
    %c0 = arith.constant 0 : index
    %c0_0 = arith.constant 0 : index
    %0 = vector.load %arg0[%c0, %c0_0] : memref<32x12xf32, #tpu.memory_space<vmem>>, vector<32x12xf32>
    %c0_1 = arith.constant 0 : index
    %c0_2 = arith.constant 0 : index
    %1 = vector.load %arg4[%c0_1, %c0_2] : memref<12x4xf32, #tpu.memory_space<vmem>>, vector<12x4xf32>
    %cst = arith.constant dense<0.000000e+00> : vector<32x4xf32>
    %2 = tpu.matmul %0, %1, %cst {dimension_numbers = #tpu.dot_dimension_numbers<[1], [0], [0], [1], [0, 0, 1, 1], [], []>} : vector<32x12xf32>, vector<12x4xf32>, vector<32x4xf32> -> vector<32x4xf32>
    %c0_3 = arith.constant 0 : index
    %c0_4 = arith.constant 0 : index
    %3 = vector.load %arg5[%c0_3, %c0_4] : memref<1x4xf32, #tpu.memory_space<vmem>>, vector<1x4xf32>
    %c0_5 = arith.constant 0 : index
    %c0_6 = arith.constant 0 : index
    %4 = vector.load %arg6[%c0_5, %c0_6] : memref<1x4xf32, #tpu.memory_space<vmem>>, vector<1x4xf32>
    %cst_7 = arith.constant dense<0.000000e+00> : vector<4xf32>
    %5 = vector.multi_reduction <add>, %2, %cst_7 [0] : vector<32x4xf32> to vector<4xf32>
    %6 = vector.shape_cast %5 : vector<4xf32> to vector<1x4xf32>
    %cst_8 = arith.constant 3.200000e+01 : f32
    %7 = vector.broadcast %cst_8 : f32 to vector<1x4xf32>
    %8 = arith.divf %6, %7 : vector<1x4xf32>
    %9 = vector.broadcast %8 : vector<1x4xf32> to vector<32x4xf32>
    %10 = arith.subf %2, %9 : vector<32x4xf32>
    %11 = arith.mulf %10, %10 : vector<32x4xf32>
    %cst_9 = arith.constant dense<0.000000e+00> : vector<4xf32>
    %12 = vector.multi_reduction <add>, %11, %cst_9 [0] : vector<32x4xf32> to vector<4xf32>
    %13 = vector.shape_cast %12 : vector<4xf32> to vector<1x4xf32>
    %cst_10 = arith.constant 3.200000e+01 : f32
    %14 = vector.broadcast %cst_10 : f32 to vector<1x4xf32>
    %15 = arith.divf %13, %14 : vector<1x4xf32>
    %cst_11 = arith.constant 9.99999974E-6 : f32
    %16 = vector.broadcast %cst_11 : f32 to vector<1x4xf32>
    %17 = arith.addf %15, %16 : vector<1x4xf32>
    %18 = math.rsqrt %17 : vector<1x4xf32>
    %19 = arith.mulf %3, %18 : vector<1x4xf32>
    %20 = arith.mulf %8, %19 : vector<1x4xf32>
    %21 = arith.subf %4, %20 : vector<1x4xf32>
    %22 = vector.broadcast %19 : vector<1x4xf32> to vector<32x4xf32>
    %23 = arith.mulf %2, %22 : vector<32x4xf32>
    %24 = vector.broadcast %21 : vector<1x4xf32> to vector<32x4xf32>
    %25 = arith.addf %23, %24 : vector<32x4xf32>
    %cst_12 = arith.constant 0.000000e+00 : f32
    %26 = vector.broadcast %cst_12 : f32 to vector<32x4xf32>
    %27 = arith.maximumf %25, %26 : vector<32x4xf32>
    %cst_13 = arith.constant 0.000000e+00 : f32
    %28 = vector.broadcast %cst_13 : f32 to vector<1x4xf32>
    %29 = vector.extract_strided_slice %27 {offsets = [0, 0], sizes = [31, 4], strides = [1, 1]} : vector<32x4xf32> to vector<31x4xf32>
    %30 = tpu.concatenate %28, %29 in 0 : vector<1x4xf32>, vector<31x4xf32> -> vector<32x4xf32>
    %c0_14 = arith.constant 0 : index
    %c0_15 = arith.constant 0 : index
    %31 = vector.load %arg2[%c0_14, %c0_15] : memref<32x1xf32, #tpu.memory_space<vmem>>, vector<32x1xf32>
    %32 = vector.broadcast %31 : vector<32x1xf32> to vector<32x4xf32>
    %33 = arith.mulf %30, %32 : vector<32x4xf32>
    %34 = vector.extract_strided_slice %27 {offsets = [1, 0], sizes = [31, 4], strides = [1, 1]} : vector<32x4xf32> to vector<31x4xf32>
    %35 = tpu.concatenate %34, %28 in 0 : vector<31x4xf32>, vector<1x4xf32> -> vector<32x4xf32>
    %c0_16 = arith.constant 0 : index
    %c0_17 = arith.constant 0 : index
    %36 = vector.load %arg3[%c0_16, %c0_17] : memref<32x1xf32, #tpu.memory_space<vmem>>, vector<32x1xf32>
    %37 = vector.broadcast %36 : vector<32x1xf32> to vector<32x4xf32>
    %38 = arith.mulf %35, %37 : vector<32x4xf32>
    %c0_18 = arith.constant 0 : index
    %c0_19 = arith.constant 0 : index
    %c0_20 = arith.constant 0 : index
    %39 = vector.load %arg7[%c0_18, %c0_19, %c0_20] : memref<3x4x4xf32, #tpu.memory_space<vmem>>, vector<1x4x4xf32>
    %40 = vector.shape_cast %39 : vector<1x4x4xf32> to vector<4x4xf32>
    %cst_21 = arith.constant dense<0.000000e+00> : vector<32x4xf32>
    %41 = tpu.matmul %33, %40, %cst_21 {dimension_numbers = #tpu.dot_dimension_numbers<[1], [0], [0], [1], [0, 0, 1, 1], [], []>} : vector<32x4xf32>, vector<4x4xf32>, vector<32x4xf32> -> vector<32x4xf32>
    %c1 = arith.constant 1 : index
    %c0_22 = arith.constant 0 : index
    %c0_23 = arith.constant 0 : index
    %42 = vector.load %arg7[%c1, %c0_22, %c0_23] : memref<3x4x4xf32, #tpu.memory_space<vmem>>, vector<1x4x4xf32>
    %43 = vector.shape_cast %42 : vector<1x4x4xf32> to vector<4x4xf32>
    %cst_24 = arith.constant dense<0.000000e+00> : vector<32x4xf32>
    %44 = tpu.matmul %27, %43, %cst_24 {dimension_numbers = #tpu.dot_dimension_numbers<[1], [0], [0], [1], [0, 0, 1, 1], [], []>} : vector<32x4xf32>, vector<4x4xf32>, vector<32x4xf32> -> vector<32x4xf32>
    %45 = arith.addf %41, %44 : vector<32x4xf32>
    %c2 = arith.constant 2 : index
    %c0_25 = arith.constant 0 : index
    %c0_26 = arith.constant 0 : index
    %46 = vector.load %arg7[%c2, %c0_25, %c0_26] : memref<3x4x4xf32, #tpu.memory_space<vmem>>, vector<1x4x4xf32>
    %47 = vector.shape_cast %46 : vector<1x4x4xf32> to vector<4x4xf32>
    %cst_27 = arith.constant dense<0.000000e+00> : vector<32x4xf32>
    %48 = tpu.matmul %38, %47, %cst_27 {dimension_numbers = #tpu.dot_dimension_numbers<[1], [0], [0], [1], [0, 0, 1, 1], [], []>} : vector<32x4xf32>, vector<4x4xf32>, vector<32x4xf32> -> vector<32x4xf32>
    %49 = arith.addf %45, %48 : vector<32x4xf32>
    %c0_28 = arith.constant 0 : index
    %c0_29 = arith.constant 0 : index
    %50 = vector.load %arg8[%c0_28, %c0_29] : memref<1x4xf32, #tpu.memory_space<vmem>>, vector<1x4xf32>
    %c0_30 = arith.constant 0 : index
    %c0_31 = arith.constant 0 : index
    %51 = vector.load %arg9[%c0_30, %c0_31] : memref<1x4xf32, #tpu.memory_space<vmem>>, vector<1x4xf32>
    %cst_32 = arith.constant dense<0.000000e+00> : vector<4xf32>
    %52 = vector.multi_reduction <add>, %49, %cst_32 [0] : vector<32x4xf32> to vector<4xf32>
    %53 = vector.shape_cast %52 : vector<4xf32> to vector<1x4xf32>
    %cst_33 = arith.constant 3.200000e+01 : f32
    %54 = vector.broadcast %cst_33 : f32 to vector<1x4xf32>
    %55 = arith.divf %53, %54 : vector<1x4xf32>
    %56 = vector.broadcast %55 : vector<1x4xf32> to vector<32x4xf32>
    %57 = arith.subf %49, %56 : vector<32x4xf32>
    %58 = arith.mulf %57, %57 : vector<32x4xf32>
    %cst_34 = arith.constant dense<0.000000e+00> : vector<4xf32>
    %59 = vector.multi_reduction <add>, %58, %cst_34 [0] : vector<32x4xf32> to vector<4xf32>
    %60 = vector.shape_cast %59 : vector<4xf32> to vector<1x4xf32>
    %cst_35 = arith.constant 3.200000e+01 : f32
    %61 = vector.broadcast %cst_35 : f32 to vector<1x4xf32>
    %62 = arith.divf %60, %61 : vector<1x4xf32>
    %cst_36 = arith.constant 9.99999974E-6 : f32
    %63 = vector.broadcast %cst_36 : f32 to vector<1x4xf32>
    %64 = arith.addf %62, %63 : vector<1x4xf32>
    %65 = math.rsqrt %64 : vector<1x4xf32>
    %66 = arith.mulf %50, %65 : vector<1x4xf32>
    %67 = arith.mulf %55, %66 : vector<1x4xf32>
    %68 = arith.subf %51, %67 : vector<1x4xf32>
    %69 = vector.broadcast %66 : vector<1x4xf32> to vector<32x4xf32>
    %70 = arith.mulf %49, %69 : vector<32x4xf32>
    %71 = vector.broadcast %68 : vector<1x4xf32> to vector<32x4xf32>
    %72 = arith.addf %70, %71 : vector<32x4xf32>
    %c0_37 = arith.constant 0 : index
    %c0_38 = arith.constant 0 : index
    %73 = vector.load %arg1[%c0_37, %c0_38] : memref<32x4xf32, #tpu.memory_space<vmem>>, vector<32x4xf32>
    %74 = arith.addf %72, %73 : vector<32x4xf32>
    %cst_39 = arith.constant 0.000000e+00 : f32
    %75 = vector.broadcast %cst_39 : f32 to vector<32x4xf32>
    %76 = arith.maximumf %74, %75 : vector<32x4xf32>
    %c0_40 = arith.constant 0 : index
    %c0_41 = arith.constant 0 : index
    %77 = vector.load %arg10[%c0_40, %c0_41] : memref<32x4xf32, #tpu.memory_space<vmem>>, vector<32x4xf32>
    tpu.vector_store %arg10[%c0_40, %c0_41], %76 {strides = array<i32>} : memref<32x4xf32, #tpu.memory_space<vmem>>, vector<32x4xf32>,
    return
  }
}

</mosaic_0001>

<llo_original>
// kernel: tpu_custom_call.1
$region0: #{tpu_custom_call.1}
  #allocation0 [shape = 'u32[]', space=smem, size = 0x4, offset = 0x4, fixed_abs, tag = 'smem constant byte address 0x4 - core index']
  #allocation1 [shape = 'u32[144,128]{1,0:T(1,128)}', space=vmem, size = 0x12000, scoped, tag = 'internal scratch']
  %s0 = inlined_call_operand.vmem [shape: f32[32,12], index: 0, kind: input, shape index: {}]
  %s1 = inlined_call_operand.vmem [shape: f32[32,4], index: 1, kind: input, shape index: {}]
  %s2 = inlined_call_operand.vmem [shape: f32[32,1], index: 2, kind: input, shape index: {}]
  %s3 = inlined_call_operand.vmem [shape: f32[32,1], index: 3, kind: input, shape index: {}]
  %s4 = inlined_call_operand.vmem [shape: f32[12,4], index: 4, kind: input, shape index: {}]
  %s5 = inlined_call_operand.vmem [shape: f32[1,4], index: 5, kind: input, shape index: {}]
  %s6 = inlined_call_operand.vmem [shape: f32[1,4], index: 6, kind: input, shape index: {}]
  %s7 = inlined_call_operand.vmem [shape: f32[3,4,4], index: 7, kind: input, shape index: {}]
  %s8 = inlined_call_operand.vmem [shape: f32[1,4], index: 8, kind: input, shape index: {}]
  %s9 = inlined_call_operand.vmem [shape: f32[1,4], index: 9, kind: input, shape index: {}]
  %s10 = inlined_call_operand.vmem [shape: f32[32,4], index: 10, kind: output, shape index: {}]
  %s11 = sld [smem:[#allocation0]]
  $region50: #{tpu_custom_call.1} parent=0
    _
  %s13 = ssub.s32 1, %s11
  %s14 = scalar_select 0, %s13, %s11
  // Predicated region
  $region2: #{tpu_custom_call.1} parent=0 // pred_check
    _
  $region3: #{tpu_custom_call.1} parent=0 // pred_check_branch
    %16 = sbr.rel (0) target = $region5
  $region4: #{tpu_custom_call.1} parent=0 // pred_region
    _
  $region5: #{tpu_custom_call.1} parent=0 // pred_fallthru
    _
  // Predicated region
  $region6: #{tpu_custom_call.1} parent=0 // pred_check
    _
  $region7: #{tpu_custom_call.1} parent=0 // pred_check_branch
    %18 = sbr.rel (0) target = $region9
  $region8: #{tpu_custom_call.1} parent=0 // pred_region
    _
  $region9: #{tpu_custom_call.1} parent=0 // pred_fallthru
    _
  // Predicated region
  $region10: #{tpu_custom_call.1} parent=0 // pred_check
    _
  $region11: #{tpu_custom_call.1} parent=0 // pred_check_branch
    %20 = sbr.rel (0) target = $region13
  $region12: #{tpu_custom_call.1} parent=0 // pred_region
    _
  $region13: #{tpu_custom_call.1} parent=0 // pred_fallthru
    _
  // Predicated region
  $region14: #{tpu_custom_call.1} parent=0 // pred_check
    _
  $region15: #{tpu_custom_call.1} parent=0 // pred_check_branch
    %22 = sbr.rel (0) target = $region17
  $region16: #{tpu_custom_call.1} parent=0 // pred_region
    _
  $region17: #{tpu_custom_call.1} parent=0 // pred_fallthru
    _
  // Predicated region
  $region18: #{tpu_custom_call.1} parent=0 // pred_check
    _
  $region19: #{tpu_custom_call.1} parent=0 // pred_check_branch
    %24 = sbr.rel (0) target = $region21
  $region20: #{tpu_custom_call.1} parent=0 // pred_region
    _
  $region21: #{tpu_custom_call.1} parent=0 // pred_fallthru
    _
  // Predicated region
  $region22: #{tpu_custom_call.1} parent=0 // pred_check
    _
  $region23: #{tpu_custom_call.1} parent=0 // pred_check_branch
    %26 = sbr.rel (0) target = $region25
  $region24: #{tpu_custom_call.1} parent=0 // pred_region
    _
  $region25: #{tpu_custom_call.1} parent=0 // pred_fallthru
    _
  // Predicated region
  $region26: #{tpu_custom_call.1} parent=0 // pred_check
    _
  $region27: #{tpu_custom_call.1} parent=0 // pred_check_branch
    %28 = sbr.rel (0) target = $region29
  $region28: #{tpu_custom_call.1} parent=0 // pred_region
    _
  $region29: #{tpu_custom_call.1} parent=0 // pred_fallthru
    _
  // Predicated region
  $region30: #{tpu_custom_call.1} parent=0 // pred_check
    _
  $region31: #{tpu_custom_call.1} parent=0 // pred_check_branch
    %30 = sbr.rel (0) target = $region33
  $region32: #{tpu_custom_call.1} parent=0 // pred_region
    _
  $region33: #{tpu_custom_call.1} parent=0 // pred_fallthru
    _
  // Predicated region
  $region34: #{tpu_custom_call.1} parent=0 // pred_check
    _
  $region35: #{tpu_custom_call.1} parent=0 // pred_check_branch
    %32 = sbr.rel (0) target = $region37
  $region36: #{tpu_custom_call.1} parent=0 // pred_region
    _
  $region37: #{tpu_custom_call.1} parent=0 // pred_fallthru
    _
  // Predicated region
  $region38: #{tpu_custom_call.1} parent=0 // pred_check
    _
  $region39: #{tpu_custom_call.1} parent=0 // pred_check_branch
    %34 = sbr.rel (0) target = $region41
  $region40: #{tpu_custom_call.1} parent=0 // pred_region
    _
  $region41: #{tpu_custom_call.1} parent=0 // pred_fallthru
    _
  %v35 = vld [vmem:[%s0] sm:$0xff]
  %v36 = vld [vmem:[%s0 + $0x8] sm:$0xff]
  %v37 = vld [vmem:[%s0 + $0x10] sm:$0xff]
  %v38 = vld [vmem:[%s0 + $0x18] sm:$0xff]
  %v39 = vld [vmem:[%s4] sm:$0xff]
  %v40 = vld [vmem:[%s4 + $0x8] sm:$0xf]
  %vm41 = vcmask 97280
  %v43 = vsel %vm41, %v35, 0
  %v46 = vsel %vm41, %v36, 0
  %v49 = vsel %vm41, %v37, 0
  %v52 = vsel %vm41, %v38, 0
  %vm54 = vcmask 1043456
  %v56 = vsel %vm54, %v40, 0
  %58 = vmatprep.subr.mxu0 0.0
  %59 = vmatpush1.msra.mxu0 %v39
  %60 = vmatprep.subr.mxu0 0.0
  %61 = vmatpush1.msra.mxu0 %v56
  %62 = vmatprep.subr.mxu0 0.0
  %63 = vmatpush1.msra.mxu0 0.0
  %64 = vmatprep.subr.mxu0 0.0
  %65 = vmatpush1.msra.mxu0 0.0
  %66 = vmatprep.subr.mxu0 0.0
  %67 = vmatpush1.msra.mxu0 0.0
  %68 = vmatprep.subr.mxu0 0.0
  %69 = vmatpush1.msra.mxu0 0.0
  %70 = vmatprep.subr.mxu0 0.0
  %71 = vmatpush1.msra.mxu0 0.0
  %72 = vmatprep.subr.mxu0 0.0
  %73 = vmatpush1.msra.mxu0 0.0
  %74 = vmatprep.subr.mxu0 0.0
  %75 = vmatpush1.msra.mxu0 0.0
  %76 = vmatprep.subr.mxu0 0.0
  %77 = vmatpush1.msra.mxu0 0.0
  %78 = vmatprep.subr.mxu0 0.0
  %79 = vmatpush1.msra.mxu0 0.0
  %80 = vmatprep.subr.mxu0 0.0
  %81 = vmatpush1.msra.mxu0 0.0
  %82 = vmatprep.subr.mxu0 0.0
  %83 = vmatpush1.msra.mxu0 0.0
  %84 = vmatprep.subr.mxu0 0.0
  %85 = vmatpush1.msra.mxu0 0.0
  %86 = vmatprep.subr.mxu0 0.0
  %87 = vmatpush1.msra.mxu0 0.0
  %88 = vmatprep.subr.mxu0 0.0
  %89 = vmatpush1.msra.mxu0 0.0
  %90 = vmatprep.subr.mxu0 0.0
  %91 = vmatpush1.msra.mxu0 0.0
  %92 = vmatprep.subr.mxu0 0.0
  %93 = vmatpush1.msra.mxu0 0.0
  %94 = vmatprep.subr.mxu0 0.0
  %95 = vmatpush1.msra.mxu0 0.0
  %96 = vmatprep.subr.mxu0 0.0
  %97 = vmatpush1.msra.mxu0 0.0
  %98 = vmatprep.subr.mxu0 0.0
  %99 = vmatpush1.msra.mxu0 0.0
  %100 = vmatprep.subr.mxu0 0.0
  %101 = vmatpush1.msra.mxu0 0.0
  %102 = vmatprep.subr.mxu0 0.0
  %103 = vmatpush1.msra.mxu0 0.0
  %104 = vmatprep.subr.mxu0 0.0
  %105 = vmatpush1.msra.mxu0 0.0
  %106 = vmatprep.subr.mxu0 0.0
  %107 = vmatpush1.msra.mxu0 0.0
  %108 = vmatprep.subr.mxu0 0.0
  %109 = vmatpush1.msra.mxu0 0.0
  %110 = vmatprep.subr.mxu0 0.0
  %111 = vmatpush1.msra.mxu0 0.0
  %112 = vmatprep.subr.mxu0 0.0
  %113 = vmatpush1.msra.mxu0 0.0
  %114 = vmatprep.subr.mxu0 0.0
  %115 = vmatpush1.msra.mxu0 0.0
  %116 = vmatprep.subr.mxu0 0.0
  %117 = vmatpush1.msra.mxu0 0.0
  %118 = vmatprep.subr.mxu0 0.0
  %119 = vmatpush1.msra.mxu0 0.0
  %120 = vmatprep.subr.mxu0 0.0
  %121 = vmatpush1.msra.mxu0 0.0
  %122 = vmatprep.mubr.f32.mxu0 0.0
  %123 = vmatmul.mubr.f32.gmra.mrb[0].mxu0 %v43
  %v124 = vpop.f32.mrb[0].mxu0
  %v125 = vadd.f32 0.0, %v124
  %v126 = vpop.f32.mrb[0].mxu0
  %127 = vmatprep.mubr.f32.mxu0 0.0
  %128 = vmatmul.mubr.f32.gmra.mrb[0].mxu0 %v46
  %v129 = vpop.f32.mrb[0].mxu0
  %v130 = vadd.f32 0.0, %v129
  %v131 = vpop.f32.mrb[0].mxu0
  %132 = vmatprep.mubr.f32.mxu0 0.0
  %133 = vmatmul.mubr.f32.gmra.mrb[0].mxu0 %v49
  %v134 = vpop.f32.mrb[0].mxu0
  %v135 = vadd.f32 0.0, %v134
  %v136 = vpop.f32.mrb[0].mxu0
  %137 = vmatprep.mubr.f32.mxu0 0.0
  %138 = vmatmul.mubr.f32.gmra.mrb[0].mxu0 %v52
  %v139 = vpop.f32.mrb[0].mxu0
  %v140 = vadd.f32 0.0, %v139
  %v141 = vpop.f32.mrb[0].mxu0
  %142 = vdwg.mxu0
  %v143 = vld [vmem:[%s5] sm:$0x1]
  %v144 = vld [vmem:[%s6] sm:$0x1]
  %vm145 = vcmask 31744
  %v146 = vsel %vm145, %v125, 0.0
  %v147 = vsel %vm145, %v130, 0.0
  %v148 = vadd.f32 %v146, %v147
  %v149 = vsel %vm145, %v135, 0.0
  %v150 = vadd.f32 %v148, %v149
  %v151 = vsel %vm145, %v140, 0.0
  %v152 = vadd.f32 %v150, %v151
  %v153 = vrot.slane %v152, 4
  %v154 = vadd.f32 %v152, %v153
  %v155 = vrot.slane %v154, 2
  %v156 = vadd.f32 %v154, %v155
  %v157 = vrot.slane %v156, 1
  %v158 = vadd.f32 %v156, %v157
  %v159 = vrcp.pop 32.0
  %v160 = vmul.f32 %v158, %v159
  %v161 = vsub.f32 %v125, %v160
  %v162 = vsub.f32 %v130, %v160
  %v163 = vsub.f32 %v135, %v160
  %v164 = vsub.f32 %v140, %v160
  %v165 = vmul.f32 %v161, %v161
  %v166 = vmul.f32 %v162, %v162
  %v167 = vmul.f32 %v163, %v163
  %v168 = vmul.f32 %v164, %v164
  %v169 = vsel %vm145, %v165, 0.0
  %v170 = vsel %vm145, %v166, 0.0
  %v171 = vadd.f32 %v169, %v170
  %v172 = vsel %vm145, %v167, 0.0
  %v173 = vadd.f32 %v171, %v172
  %v174 = vsel %vm145, %v168, 0.0
  %v175 = vadd.f32 %v173, %v174
  %v176 = vrot.slane %v175, 4
  %v177 = vadd.f32 %v175, %v176
  %v178 = vrot.slane %v177, 2
  %v179 = vadd.f32 %v177, %v178
  %v180 = vrot.slane %v179, 1
  %v181 = vadd.f32 %v179, %v180
  %v182 = vmul.f32 %v181, %v159
  %v183 = vadd.f32 %v182, 1e-05
  %v184 = vrsqrt.pop %v183
  %v185 = vmul.f32 %v143, %v184
  %v186 = vmul.f32 %v160, %v185
  %v187 = vsub.f32 %v144, %v186
  %v189 = vlaneseq
  %v190 = vshrl.u32 %v189, 7
  %v191 = vsub.s32 0, %v190
  %v192 = vrot.slane %v185, %v191
  %v194 = vmul.f32 %v125, %v192
  %v195 = vmul.f32 %v130, %v192
  %v196 = vmul.f32 %v135, %v192
  %v197 = vmul.f32 %v140, %v192
  %v199 = vlaneseq
  %v200 = vshrl.u32 %v199, 7
  %v201 = vsub.s32 0, %v200
  %v202 = vrot.slane %v187, %v201
  %v204 = vadd.f32 %v194, %v202
  %v205 = vadd.f32 %v195, %v202
  %v206 = vadd.f32 %v196, %v202
  %v207 = vadd.f32 %v197, %v202
  %v208 = vmax.f32 %v204, 0.0
  %v209 = vmax.f32 %v205, 0.0
  %v210 = vmax.f32 %v206, 0.0
  %v211 = vmax.f32 %v207, 0.0
  %vm216 = vcmask 1040384
  %v217 = vrot.slane %v208, 7
  %v218 = vrot.slane %v209, 7
  %v219 = vsel %vm216, %v217, %v218
  %v220 = vrot.slane %v210, 7
  %v221 = vsel %vm216, %v218, %v220
  %v222 = vrot.slane %v211, 7
  %v223 = vsel %vm216, %v220, %v222
  %v228 = vsel %vm216, 0.0, %v217
  %v229 = vld [vmem:[%s2] sm:$0xff]
  %v230 = vld [vmem:[%s2 + $0x8] sm:$0xff]
  %v231 = vld [vmem:[%s2 + $0x10] sm:$0xff]
  %v232 = vld [vmem:[%s2 + $0x18] sm:$0xff]
  %234 = vset.pattern.permute.xlu0 0
  %235 = vperm.xlu0 %234, %v229
  %v236 = vpop.permute.xlu0 %235
  %239 = vset.pattern.permute.xlu0 0
  %240 = vperm.xlu0 %239, %v230
  %v241 = vpop.permute.xlu0 %240
  %244 = vset.pattern.permute.xlu0 0
  %245 = vperm.xlu0 %244, %v231
  %v246 = vpop.permute.xlu0 %245
  %249 = vset.pattern.permute.xlu0 0
  %250 = vperm.xlu0 %249, %v232
  %v251 = vpop.permute.xlu0 %250
  %v253 = vmul.f32 %v228, %v236
  %v254 = vmul.f32 %v219, %v241
  %v255 = vmul.f32 %v221, %v246
  %v256 = vmul.f32 %v223, %v251
  %vm257 = vcmask 1046528
  %v258 = vrot.slane %v208, 1
  %v259 = vrot.slane %v209, 1
  %v260 = vsel %vm257, %v258, %v259
  %v261 = vrot.slane %v210, 1
  %v262 = vsel %vm257, %v259, %v261
  %v263 = vrot.slane %v211, 1
  %v264 = vsel %vm257, %v261, %v263
  %v269 = vsel %vm257, %v263, 0.0
  %v270 = vld [vmem:[%s3] sm:$0xff]
  %v271 = vld [vmem:[%s3 + $0x8] sm:$0xff]
  %v272 = vld [vmem:[%s3 + $0x10] sm:$0xff]
  %v273 = vld [vmem:[%s3 + $0x18] sm:$0xff]
  %275 = vset.pattern.permute.xlu0 0
  %276 = vperm.xlu0 %275, %v270
  %v277 = vpop.permute.xlu0 %276
  %280 = vset.pattern.permute.xlu0 0
  %281 = vperm.xlu0 %280, %v271
  %v282 = vpop.permute.xlu0 %281
  %285 = vset.pattern.permute.xlu0 0
  %286 = vperm.xlu0 %285, %v272
  %v287 = vpop.permute.xlu0 %286
  %290 = vset.pattern.permute.xlu0 0
  %291 = vperm.xlu0 %290, %v273
  %v292 = vpop.permute.xlu0 %291
  %v294 = vmul.f32 %v260, %v277
  %v295 = vmul.f32 %v262, %v282
  %v296 = vmul.f32 %v264, %v287
  %v297 = vmul.f32 %v269, %v292
  %v298 = vld [vmem:[%s7] sm:$0xf]
  %s299 = scalar_lea.vmem %s7, 4
  %v300 = vld [vmem:[%s299] sm:$0xf]
  %v301 = vsel %vm145, %v208, 0
  %v303 = vsel %vm145, %v209, 0
  %v305 = vsel %vm145, %v210, 0
  %v307 = vsel %vm145, %v211, 0
  %v310 = vsel %vm54, %v300, 0
  %312 = vmatprep.subr.mxu0 0.0
  %313 = vmatpush1.msra.mxu0 %v310
  %314 = vmatprep.subr.mxu0 0.0
  %315 = vmatpush1.msra.mxu0 0.0
  %316 = vmatprep.subr.mxu0 0.0
  %317 = vmatpush1.msra.mxu0 0.0
  %318 = vmatprep.subr.mxu0 0.0
  %319 = vmatpush1.msra.mxu0 0.0
  %320 = vmatprep.subr.mxu0 0.0
  %321 = vmatpush1.msra.mxu0 0.0
  %322 = vmatprep.subr.mxu0 0.0
  %323 = vmatpush1.msra.mxu0 0.0
  %324 = vmatprep.subr.mxu0 0.0
  %325 = vmatpush1.msra.mxu0 0.0
  %326 = vmatprep.subr.mxu0 0.0
  %327 = vmatpush1.msra.mxu0 0.0
  %328 = vmatprep.subr.mxu0 0.0
  %329 = vmatpush1.msra.mxu0 0.0
  %330 = vmatprep.subr.mxu0 0.0
  %331 = vmatpush1.msra.mxu0 0.0
  %332 = vmatprep.subr.mxu0 0.0
  %333 = vmatpush1.msra.mxu0 0.0
  %334 = vmatprep.subr.mxu0 0.0
  %335 = vmatpush1.msra.mxu0 0.0
  %336 = vmatprep.subr.mxu0 0.0
  %337 = vmatpush1.msra.mxu0 0.0
  %338 = vmatprep.subr.mxu0 0.0
  %339 = vmatpush1.msra.mxu0 0.0
  %340 = vmatprep.subr.mxu0 0.0
  %341 = vmatpush1.msra.mxu0 0.0
  %342 = vmatprep.subr.mxu0 0.0
  %343 = vmatpush1.msra.mxu0 0.0
  %344 = vmatprep.subr.mxu0 0.0
  %345 = vmatpush1.msra.mxu0 0.0
  %346 = vmatprep.subr.mxu0 0.0
  %347 = vmatpush1.msra.mxu0 0.0
  %348 = vmatprep.subr.mxu0 0.0
  %349 = vmatpush1.msra.mxu0 0.0
  %350 = vmatprep.subr.mxu0 0.0
  %351 = vmatpush1.msra.mxu0 0.0
  %352 = vmatprep.subr.mxu0 0.0
  %353 = vmatpush1.msra.mxu0 0.0
  %354 = vmatprep.subr.mxu0 0.0
  %355 = vmatpush1.msra.mxu0 0.0
  %356 = vmatprep.subr.mxu0 0.0
  %357 = vmatpush1.msra.mxu0 0.0
  %358 = vmatprep.subr.mxu0 0.0
  %359 = vmatpush1.msra.mxu0 0.0
  %360 = vmatprep.subr.mxu0 0.0
  %361 = vmatpush1.msra.mxu0 0.0
  %362 = vmatprep.subr.mxu0 0.0
  %363 = vmatpush1.msra.mxu0 0.0
  %364 = vmatprep.subr.mxu0 0.0
  %365 = vmatpush1.msra.mxu0 0.0
  %366 = vmatprep.subr.mxu0 0.0
  %367 = vmatpush1.msra.mxu0 0.0
  %368 = vmatprep.subr.mxu0 0.0
  %369 = vmatpush1.msra.mxu0 0.0
  %370 = vmatprep.subr.mxu0 0.0
  %371 = vmatpush1.msra.mxu0 0.0
  %372 = vmatprep.subr.mxu0 0.0
  %373 = vmatpush1.msra.mxu0 0.0
  %374 = vmatprep.subr.mxu0 0.0
  %375 = vmatpush1.msra.mxu0 0.0
  %376 = vmatprep.mubr.f32.mxu0 0.0
  %377 = vmatmul.mubr.f32.gmra.mrb[0].mxu0 %v301
  %v378 = vpop.f32.mrb[0].mxu0
  %v379 = vadd.f32 0.0, %v378
  %v380 = vpop.f32.mrb[0].mxu0
  %381 = vmatprep.mubr.f32.mxu0 0.0
  %382 = vmatmul.mubr.f32.gmra.mrb[0].mxu0 %v303
  %v383 = vpop.f32.mrb[0].mxu0
  %v384 = vadd.f32 0.0, %v383
  %v385 = vpop.f32.mrb[0].mxu0
  %386 = vmatprep.mubr.f32.mxu0 0.0
  %387 = vmatmul.mubr.f32.gmra.mrb[0].mxu0 %v305
  %v388 = vpop.f32.mrb[0].mxu0
  %v389 = vadd.f32 0.0, %v388
  %v390 = vpop.f32.mrb[0].mxu0
  %391 = vmatprep.mubr.f32.mxu0 0.0
  %392 = vmatmul.mubr.f32.gmra.mrb[0].mxu0 %v307
  %v393 = vpop.f32.mrb[0].mxu0
  %v394 = vadd.f32 0.0, %v393
  %v395 = vpop.f32.mrb[0].mxu0
  %396 = vdwg.mxu0
  %v398 = vsel %vm145, %v253, 0
  %v401 = vsel %vm145, %v254, 0
  %v404 = vsel %vm145, %v255, 0
  %v407 = vsel %vm145, %v256, 0
  %v410 = vsel %vm54, %v298, 0
  %412 = vmatprep.subr.mxu0 0.0
  %413 = vmatpush1.msra.mxu0 %v410
  %414 = vmatprep.subr.mxu0 0.0
  %415 = vmatpush1.msra.mxu0 0.0
  %416 = vmatprep.subr.mxu0 0.0
  %417 = vmatpush1.msra.mxu0 0.0
  %418 = vmatprep.subr.mxu0 0.0
  %419 = vmatpush1.msra.mxu0 0.0
  %420 = vmatprep.subr.mxu0 0.0
  %421 = vmatpush1.msra.mxu0 0.0
  %422 = vmatprep.subr.mxu0 0.0
  %423 = vmatpush1.msra.mxu0 0.0
  %424 = vmatprep.subr.mxu0 0.0
  %425 = vmatpush1.msra.mxu0 0.0
  %426 = vmatprep.subr.mxu0 0.0
  %427 = vmatpush1.msra.mxu0 0.0
  %428 = vmatprep.subr.mxu0 0.0
  %429 = vmatpush1.msra.mxu0 0.0
  %430 = vmatprep.subr.mxu0 0.0
  %431 = vmatpush1.msra.mxu0 0.0
  %432 = vmatprep.subr.mxu0 0.0
  %433 = vmatpush1.msra.mxu0 0.0
  %434 = vmatprep.subr.mxu0 0.0
  %435 = vmatpush1.msra.mxu0 0.0
  %436 = vmatprep.subr.mxu0 0.0
  %437 = vmatpush1.msra.mxu0 0.0
  %438 = vmatprep.subr.mxu0 0.0
  %439 = vmatpush1.msra.mxu0 0.0
  %440 = vmatprep.subr.mxu0 0.0
  %441 = vmatpush1.msra.mxu0 0.0
  %442 = vmatprep.subr.mxu0 0.0
  %443 = vmatpush1.msra.mxu0 0.0
  %444 = vmatprep.subr.mxu0 0.0
  %445 = vmatpush1.msra.mxu0 0.0
  %446 = vmatprep.subr.mxu0 0.0
  %447 = vmatpush1.msra.mxu0 0.0
  %448 = vmatprep.subr.mxu0 0.0
  %449 = vmatpush1.msra.mxu0 0.0
  %450 = vmatprep.subr.mxu0 0.0
  %451 = vmatpush1.msra.mxu0 0.0
  %452 = vmatprep.subr.mxu0 0.0
  %453 = vmatpush1.msra.mxu0 0.0
  %454 = vmatprep.subr.mxu0 0.0
  %455 = vmatpush1.msra.mxu0 0.0
  %456 = vmatprep.subr.mxu0 0.0
  %457 = vmatpush1.msra.mxu0 0.0
  %458 = vmatprep.subr.mxu0 0.0
  %459 = vmatpush1.msra.mxu0 0.0
  %460 = vmatprep.subr.mxu0 0.0
  %461 = vmatpush1.msra.mxu0 0.0
  %462 = vmatprep.subr.mxu0 0.0
  %463 = vmatpush1.msra.mxu0 0.0
  %464 = vmatprep.subr.mxu0 0.0
  %465 = vmatpush1.msra.mxu0 0.0
  %466 = vmatprep.subr.mxu0 0.0
  %467 = vmatpush1.msra.mxu0 0.0
  %468 = vmatprep.subr.mxu0 0.0
  %469 = vmatpush1.msra.mxu0 0.0
  %470 = vmatprep.subr.mxu0 0.0
  %471 = vmatpush1.msra.mxu0 0.0
  %472 = vmatprep.subr.mxu0 0.0
  %473 = vmatpush1.msra.mxu0 0.0
  %474 = vmatprep.subr.mxu0 0.0
  %475 = vmatpush1.msra.mxu0 0.0
  %476 = vmatprep.mubr.f32.mxu0 0.0
  %477 = vmatmul.mubr.f32.gmra.mrb[0].mxu0 %v398
  %v478 = vpop.f32.mrb[0].mxu0
  %v479 = vadd.f32 %v379, %v478
  %v480 = vpop.f32.mrb[0].mxu0
  %481 = vmatprep.mubr.f32.mxu0 0.0
  %482 = vmatmul.mubr.f32.gmra.mrb[0].mxu0 %v401
  %v483 = vpop.f32.mrb[0].mxu0
  %v484 = vadd.f32 %v384, %v483
  %v485 = vpop.f32.mrb[0].mxu0
  %486 = vmatprep.mubr.f32.mxu0 0.0
  %487 = vmatmul.mubr.f32.gmra.mrb[0].mxu0 %v404
  %v488 = vpop.f32.mrb[0].mxu0
  %v489 = vadd.f32 %v389, %v488
  %v490 = vpop.f32.mrb[0].mxu0
  %491 = vmatprep.mubr.f32.mxu0 0.0
  %492 = vmatmul.mubr.f32.gmra.mrb[0].mxu0 %v407
  %v493 = vpop.f32.mrb[0].mxu0
  %v494 = vadd.f32 %v394, %v493
  %v495 = vpop.f32.mrb[0].mxu0
  %496 = vdwg.mxu0
  %s497 = scalar_lea.vmem %s7, 8
  %v498 = vld [vmem:[%s497] sm:$0xf]
  %v500 = vsel %vm145, %v294, 0
  %v503 = vsel %vm145, %v295, 0
  %v506 = vsel %vm145, %v296, 0
  %v509 = vsel %vm145, %v297, 0
  %v512 = vsel %vm54, %v498, 0
  %514 = vmatprep.subr.mxu0 0.0
  %515 = vmatpush1.msra.mxu0 %v512
  %516 = vmatprep.subr.mxu0 0.0
  %517 = vmatpush1.msra.mxu0 0.0
  %518 = vmatprep.subr.mxu0 0.0
  %519 = vmatpush1.msra.mxu0 0.0
  %520 = vmatprep.subr.mxu0 0.0
  %521 = vmatpush1.msra.mxu0 0.0
  %522 = vmatprep.subr.mxu0 0.0
  %523 = vmatpush1.msra.mxu0 0.0
  %524 = vmatprep.subr.mxu0 0.0
  %525 = vmatpush1.msra.mxu0 0.0
  %526 = vmatprep.subr.mxu0 0.0
  %527 = vmatpush1.msra.mxu0 0.0
  %528 = vmatprep.subr.mxu0 0.0
  %529 = vmatpush1.msra.mxu0 0.0
  %530 = vmatprep.subr.mxu0 0.0
  %531 = vmatpush1.msra.mxu0 0.0
  %532 = vmatprep.subr.mxu0 0.0
  %533 = vmatpush1.msra.mxu0 0.0
  %534 = vmatprep.subr.mxu0 0.0
  %535 = vmatpush1.msra.mxu0 0.0
  %536 = vmatprep.subr.mxu0 0.0
  %537 = vmatpush1.msra.mxu0 0.0
  %538 = vmatprep.subr.mxu0 0.0
  %539 = vmatpush1.msra.mxu0 0.0
  %540 = vmatprep.subr.mxu0 0.0
  %541 = vmatpush1.msra.mxu0 0.0
  %542 = vmatprep.subr.mxu0 0.0
  %543 = vmatpush1.msra.mxu0 0.0
  %544 = vmatprep.subr.mxu0 0.0
  %545 = vmatpush1.msra.mxu0 0.0
  %546 = vmatprep.subr.mxu0 0.0
  %547 = vmatpush1.msra.mxu0 0.0
  %548 = vmatprep.subr.mxu0 0.0
  %549 = vmatpush1.msra.mxu0 0.0
  %550 = vmatprep.subr.mxu0 0.0
  %551 = vmatpush1.msra.mxu0 0.0
  %552 = vmatprep.subr.mxu0 0.0
  %553 = vmatpush1.msra.mxu0 0.0
  %554 = vmatprep.subr.mxu0 0.0
  %555 = vmatpush1.msra.mxu0 0.0
  %556 = vmatprep.subr.mxu0 0.0
  %557 = vmatpush1.msra.mxu0 0.0
  %558 = vmatprep.subr.mxu0 0.0
  %559 = vmatpush1.msra.mxu0 0.0
  %560 = vmatprep.subr.mxu0 0.0
  %561 = vmatpush1.msra.mxu0 0.0
  %562 = vmatprep.subr.mxu0 0.0
  %563 = vmatpush1.msra.mxu0 0.0
  %564 = vmatprep.subr.mxu0 0.0
  %565 = vmatpush1.msra.mxu0 0.0
  %566 = vmatprep.subr.mxu0 0.0
  %567 = vmatpush1.msra.mxu0 0.0
  %568 = vmatprep.subr.mxu0 0.0
  %569 = vmatpush1.msra.mxu0 0.0
  %570 = vmatprep.subr.mxu0 0.0
  %571 = vmatpush1.msra.mxu0 0.0
  %572 = vmatprep.subr.mxu0 0.0
  %573 = vmatpush1.msra.mxu0 0.0
  %574 = vmatprep.subr.mxu0 0.0
  %575 = vmatpush1.msra.mxu0 0.0
  %576 = vmatprep.subr.mxu0 0.0
  %577 = vmatpush1.msra.mxu0 0.0
  %578 = vmatprep.mubr.f32.mxu0 0.0
  %579 = vmatmul.mubr.f32.gmra.mrb[0].mxu0 %v500
  %v580 = vpop.f32.mrb[0].mxu0
  %v581 = vadd.f32 0.0, %v580
  %v582 = vpop.f32.mrb[0].mxu0
  %583 = vmatprep.mubr.f32.mxu0 0.0
  %584 = vmatmul.mubr.f32.gmra.mrb[0].mxu0 %v503
  %v585 = vpop.f32.mrb[0].mxu0
  %v586 = vadd.f32 0.0, %v585
  %v587 = vpop.f32.mrb[0].mxu0
  %588 = vmatprep.mubr.f32.mxu0 0.0
  %589 = vmatmul.mubr.f32.gmra.mrb[0].mxu0 %v506
  %v590 = vpop.f32.mrb[0].mxu0
  %v591 = vadd.f32 0.0, %v590
  %v592 = vpop.f32.mrb[0].mxu0
  %593 = vmatprep.mubr.f32.mxu0 0.0
  %594 = vmatmul.mubr.f32.gmra.mrb[0].mxu0 %v509
  %v595 = vpop.f32.mrb[0].mxu0
  %v596 = vadd.f32 0.0, %v595
  %v597 = vpop.f32.mrb[0].mxu0
  %598 = vdwg.mxu0
  %v599 = vadd.f32 %v479, %v581
  %v600 = vadd.f32 %v484, %v586
  %v601 = vadd.f32 %v489, %v591
  %v602 = vadd.f32 %v494, %v596
  %v603 = vld [vmem:[%s8] sm:$0x1]
  %v604 = vld [vmem:[%s9] sm:$0x1]
  %v605 = vsel %vm145, %v599, 0.0
  %v606 = vsel %vm145, %v600, 0.0
  %v607 = vadd.f32 %v605, %v606
  %v608 = vsel %vm145, %v601, 0.0
  %v609 = vadd.f32 %v607, %v608
  %v610 = vsel %vm145, %v602, 0.0
  %v611 = vadd.f32 %v609, %v610
  %v612 = vrot.slane %v611, 4
  %v613 = vadd.f32 %v611, %v612
  %v614 = vrot.slane %v613, 2
  %v615 = vadd.f32 %v613, %v614
  %v616 = vrot.slane %v615, 1
  %v617 = vadd.f32 %v615, %v616
  %v618 = vmul.f32 %v617, %v159
  %v619 = vsub.f32 %v599, %v618
  %v620 = vsub.f32 %v600, %v618
  %v621 = vsub.f32 %v601, %v618
  %v622 = vsub.f32 %v602, %v618
  %v623 = vmul.f32 %v619, %v619
  %v624 = vmul.f32 %v620, %v620
  %v625 = vmul.f32 %v621, %v621
  %v626 = vmul.f32 %v622, %v622
  %v627 = vsel %vm145, %v623, 0.0
  %v628 = vsel %vm145, %v624, 0.0
  %v629 = vadd.f32 %v627, %v628
  %v630 = vsel %vm145, %v625, 0.0
  %v631 = vadd.f32 %v629, %v630
  %v632 = vsel %vm145, %v626, 0.0
  %v633 = vadd.f32 %v631, %v632
  %v634 = vrot.slane %v633, 4
  %v635 = vadd.f32 %v633, %v634
  %v636 = vrot.slane %v635, 2
  %v637 = vadd.f32 %v635, %v636
  %v638 = vrot.slane %v637, 1
  %v639 = vadd.f32 %v637, %v638
  %v640 = vmul.f32 %v639, %v159
  %v641 = vadd.f32 %v640, 1e-05
  %v642 = vrsqrt.pop %v641
  %v643 = vmul.f32 %v603, %v642
  %v644 = vmul.f32 %v618, %v643
  %v645 = vsub.f32 %v604, %v644
  %v647 = vlaneseq
  %v648 = vshrl.u32 %v647, 7
  %v649 = vsub.s32 0, %v648
  %v650 = vrot.slane %v643, %v649
  %v652 = vmul.f32 %v599, %v650
  %v653 = vmul.f32 %v600, %v650
  %v654 = vmul.f32 %v601, %v650
  %v655 = vmul.f32 %v602, %v650
  %v657 = vlaneseq
  %v658 = vshrl.u32 %v657, 7
  %v659 = vsub.s32 0, %v658
  %v660 = vrot.slane %v645, %v659
  %v662 = vadd.f32 %v652, %v660
  %v663 = vadd.f32 %v653, %v660
  %v664 = vadd.f32 %v654, %v660
  %v665 = vadd.f32 %v655, %v660
  %v666 = vld [vmem:[%s1] sm:$0xff]
  %v667 = vld [vmem:[%s1 + $0x8] sm:$0xff]
  %v668 = vld [vmem:[%s1 + $0x10] sm:$0xff]
  %v669 = vld [vmem:[%s1 + $0x18] sm:$0xff]
  %v670 = vadd.f32 %v662, %v666
  %v671 = vadd.f32 %v663, %v667
  %v672 = vadd.f32 %v664, %v668
  %v673 = vadd.f32 %v665, %v669
  %v674 = vmax.f32 %v670, 0.0
  %v675 = vmax.f32 %v671, 0.0
  %v676 = vmax.f32 %v672, 0.0
  %v677 = vmax.f32 %v673, 0.0
  %678 = vst.msk [vmem:[%s10] sm:$0xff] %vm145, %v674
  %679 = vst.msk [vmem:[%s10 + $0x8] sm:$0xff] %vm145, %v675
  %680 = vst.msk [vmem:[%s10 + $0x10] sm:$0xff] %vm145, %v676
  %681 = vst.msk [vmem:[%s10 + $0x18] sm:$0xff] %vm145, %v677
  // Predicated region
  $region42: #{tpu_custom_call.1} parent=0 // pred_check
    _
  $region43: #{tpu_custom_call.1} parent=0 // pred_check_branch
    %683 = sbr.rel (0) target = $region45
  $region44: #{tpu_custom_call.1} parent=0 // pred_region
    _
  $region45: #{tpu_custom_call.1} parent=0 // pred_fallthru
    _
  // Predicated region
  $region46: #{tpu_custom_call.1} parent=0 // pred_check
    _
  $region47: #{tpu_custom_call.1} parent=0 // pred_check_branch
    %685 = sbr.rel (0) target = $region49
  $region48: #{tpu_custom_call.1} parent=0 // pred_region
    _
  $region49: #{tpu_custom_call.1} parent=0 // pred_fallthru
    _

</llo_original>
